<compile_context>
chip_gen: v7x
topology: tpu7x:2x2x1
jax: 0.10.0
libtpu: 0.0.40
codegen_flags: <defaults>
</compile_context>

<pallas_src>
import jax
import jax.numpy as jnp
from jax.experimental import pallas as pl
from jax.experimental.pallas import tpu as pltpu


def _round_up(v, m):
    return (v + m - 1) // m * m


# ------------------------------ Pallas kernel --------------------------------


def _fused_gcn_kernel(a_ref, x_ref, w_ref, b_ref, alpha_ref, o_ref):
    """grid = (row tiles i, reduction tiles k).

    a_ref:     (tm, tk)      normalized adjacency tile        (stream dtype)
    x_ref:     (tk, F_in)    node-feature tile                 (f32)
    w_ref:     (F_in, H_pad) GCN weight, VMEM-resident         (f32)
    b_ref:     (1,  H_pad)   GCN bias, resident                (f32)
    alpha_ref: (1,  H_pad)   PReLU per-channel alpha, resident (f32)
    o_ref:     (tm, H_pad)   f32 output block; doubles as the accumulator
                             (its block index is constant across k).
    """
    k = pl.program_id(1)

    @pl.when(k == 0)
    def _init():
        o_ref[...] = jnp.zeros_like(o_ref)

    # Tiny (tk, F_in) @ (F_in, H_pad) recompute — negligible FLOPs, fully
    # hidden under the A-tile DMA (the kernel is HBM-bound on the N^2 stream).
    xw = jnp.dot(x_ref[...], w_ref[...], preferred_element_type=jnp.float32)

    # (tm, tk) @ (tk, H_pad) with f32 accumulation directly into the output
    # block.  Cast xw to the adjacency stream dtype so a bf16 stream keeps the
    # MXU on its native bf16 path (no-op for f32).
    o_ref[...] += jnp.dot(
        a_ref[...], xw.astype(a_ref.dtype), preferred_element_type=jnp.float32
    )

    @pl.when(k == pl.num_programs(1) - 1)
    def _epilogue():
        h = o_ref[...] + b_ref[...]                       # GCNConv bias
        o_ref[...] = jnp.where(h > 0.0, h, alpha_ref[...] * h)   # PReLU


# ----------------------------- JAX glue (graph) -------------------------------


def gcn_norm_dense(edge_index, num_nodes, *, padded_nodes=None, dtype=jnp.float32):
    """Dense D^{-1/2} (A + I) D^{-1/2}, matching PyG GCNConv gcn_norm
    (flow source_to_target: message from edge_index[0] to edge_index[1]).

    Built directly at the padded shape and target dtype so the wrapper never
    materializes an extra padded N^2 copy in HBM.  Padded nodes have zero
    degree -> zero rows/cols, so real-node results are unaffected.

    Note: edges are *set* (deduplicated); PyG scatter-adds, so results diverge
    for multigraphs / duplicate entries in edge_index.
    """
    n_pad = num_nodes if padded_nodes is None else padded_nodes
    src = edge_index[0]
    dst = edge_index[1]
    adj = jnp.zeros((n_pad, n_pad), dtype=jnp.float32)
    adj = adj.at[dst, src].set(1.0)                    # A[i, j] = 1 if edge j -> i
    diag = jnp.arange(num_nodes)
    adj = adj.at[diag, diag].set(1.0)                  # self loops (set, not add)
    deg = adj.sum(axis=1)
    dinv = jnp.where(deg > 0, 1.0 / jnp.sqrt(deg), 0.0)
    return (dinv[:, None] * adj * dinv[None, :]).astype(dtype)
    # TODO(synk): for very large sparse graphs, replace this dense A_hat with a
    # CSR/block-sparse layout + PrefetchScalarGridSpec so empty tiles are skipped.


# -------------------------------- wrapper -------------------------------------


def encoder_forward(x, edge_index, weight, bias, alpha, *,
                    stream_dtype=jnp.float32):
    """x: [N, F_in], edge_index: [2, E], weight: [F_in, H], bias: [H], alpha: [H].

    stream_dtype controls the HBM dtype of the dominant N^2 adjacency stream.
    Use jnp.bfloat16 on HBM-bound v5e/v6e production runs (f32 accumulation is
    always kept); f32 here so the tight reference check holds.
    """
    N, F_in = x.shape
    H = weight.shape[1]

    # Lane-dense channel padding (H=32 -> 128) for unmasked vst + full MXU cols.
    H_pad = _round_up(H, 128)

    # Tile selection: one 128-aligned tile for small graphs (single grid point,
    # fixed overhead paid once); (512, 1024) tiles for large graphs.  N_pad is
    # a multiple of tk, which also makes the row-tile count (N_pad // tm) even
    # so v7x's two TensorCores get balanced "parallel" row tiles.
    N_lane = _round_up(N, 128)
    if N_lane <= 1024:
        tm = tk = N_pad = N_lane
    else:
        tm, tk = 512, 1024
        N_pad = _round_up(N, tk)

    # A_hat built directly at (N_pad, N_pad) in stream_dtype (no pad round-trip).
    a = gcn_norm_dense(edge_index, N, padded_nodes=N_pad, dtype=stream_dtype)

    # x is only row-padded; F_in stays at its (tiny) native width.
    xp = jnp.zeros((N_pad, F_in), jnp.float32).at[:N, :].set(x.astype(jnp.float32))
    wp = jnp.zeros((F_in, H_pad), jnp.float32).at[:, :H].set(weight.astype(jnp.float32))
    bp = jnp.zeros((1, H_pad), jnp.float32).at[0, :H].set(bias.astype(jnp.float32))
    ap = jnp.zeros((1, H_pad), jnp.float32).at[0, :H].set(alpha.astype(jnp.float32))

    grid = (N_pad // tm, N_pad // tk)

    # Working set (double-buffered A + X + resident W/b/alpha + output block)
    # is ~5 MiB at (512, 1024) f32 — well under the 32 MiB limit we request,
    # which itself is safe on v5e/v6e (128 MiB physical) and v7x (64 MiB).
    out = pl.pallas_call(
        _fused_gcn_kernel,
        out_shape=jax.ShapeDtypeStruct((N_pad, H_pad), jnp.float32),
        grid=grid,
        in_specs=[
            pl.BlockSpec((tm, tk), lambda i, k: (i, k)),       # A_hat tile
            pl.BlockSpec((tk, F_in), lambda i, k: (k, 0)),     # X tile (full last dim)
            pl.BlockSpec((F_in, H_pad), lambda i, k: (0, 0)),  # W (resident)
            pl.BlockSpec((1, H_pad), lambda i, k: (0, 0)),     # bias (resident)
            pl.BlockSpec((1, H_pad), lambda i, k: (0, 0)),     # alpha (resident)
        ],
        out_specs=pl.BlockSpec((tm, H_pad), lambda i, k: (i, 0)),
        compiler_params=pltpu.CompilerParams(
            dimension_semantics=("parallel", "arbitrary"),
            vmem_limit_bytes=32 * 1024 * 1024,
        ),
    )(a, xp, wp, bp, ap)

    return out[:N, :H]


# ---------------------------------- demo --------------------------------------


if __name__ == "__main__":
    N = 8            # number of graph nodes
    IN_CH = 4        # in_channels
    HIDDEN = 32      # hidden_channels

    key = jax.random.PRNGKey(0)
    kx, kw = jax.random.split(key)

    # Node features [N, IN_CH]
    x = jax.random.normal(kx, (N, IN_CH), dtype=jnp.float32)

    # Deterministic edge_index: a bidirectional ring over N nodes, shape [2, E]
    idx = jnp.arange(N, dtype=jnp.int32)
    src = jnp.concatenate([idx, (idx + 1) % N])
    dst = jnp.concatenate([(idx + 1) % N, idx])
    edge_index = jnp.stack([src, dst], axis=0)

    # GCNConv parameters (glorot-like weight, zero bias), PReLU alpha = 0.25
    limit = (6.0 / (IN_CH + HIDDEN)) ** 0.5
    weight = jax.random.uniform(
        kw, (IN_CH, HIDDEN), minval=-limit, maxval=limit, dtype=jnp.float32)
    bias = jnp.zeros((HIDDEN,), dtype=jnp.float32)
    alpha = jnp.full((HIDDEN,), 0.25, dtype=jnp.float32)

    out = encoder_forward(x, edge_index, weight, bias, alpha)
    out = jax.block_until_ready(out)

    # Reference check in plain JAX (same math, unpadded)
    adj_norm = gcn_norm_dense(edge_index, N)
    ref = adj_norm @ (x @ weight) + bias[None, :]
    ref = jnp.where(ref > 0, ref, alpha[None, :] * ref)
    assert out.shape == (N, HIDDEN)
    assert jnp.allclose(out, ref, atol=1e-5, rtol=1e-5)

    print("KERNEL_OK")
</pallas_src>

<mosaic_0001>
module attributes {stable_mosaic.version = 11 : i64} {
  func.func @_fused_gcn_kernel(%arg0: i32, %arg1: i32, %arg2: memref<128x128xf32, #tpu.memory_space<vmem>>, %arg3: memref<128x4xf32, #tpu.memory_space<vmem>>, %arg4: memref<4x128xf32, #tpu.memory_space<vmem>>, %arg5: memref<1x128xf32, #tpu.memory_space<vmem>>, %arg6: memref<1x128xf32, #tpu.memory_space<vmem>>, %arg7: memref<128x128xf32, #tpu.memory_space<vmem>>) attributes {dimension_semantics = [#tpu.dimension_semantics<parallel>, #tpu.dimension_semantics<arbitrary>], iteration_bounds = array<i64: 1, 1>, scalar_prefetch = 0 : i64, scratch_operands = 0 : i64, tpu.core_type = #tpu.core_type<tc>, window_params = [{transform_indices = @transform_0, window_bounds = array<i64: 128, 128>}, {transform_indices = @transform_1, window_bounds = array<i64: 128, 4>}, {pipeline_mode = #tpu.pipeline_mode<synchronous>, transform_indices = @transform_2, window_bounds = array<i64: 4, 128>}, {pipeline_mode = #tpu.pipeline_mode<synchronous>, transform_indices = @transform_3, window_bounds = array<i64: 1, 128>}, {pipeline_mode = #tpu.pipeline_mode<synchronous>, transform_indices = @transform_4, window_bounds = array<i64: 1, 128>}, {transform_indices = @transform_5, window_bounds = array<i64: 128, 128>}]} {
    %c0_i32 = arith.constant 0 : i32
    %0 = arith.cmpi eq, %arg1, %c0_i32 : i32
    %1 = arith.extui %0 : i1 to i32
    %c0_i32_0 = arith.constant 0 : i32
    %2 = arith.cmpi ne, %1, %c0_i32_0 : i32
    scf.if %2 {
      %cst_13 = arith.constant 0.000000e+00 : f32
      %14 = vector.broadcast %cst_13 : f32 to vector<128x128xf32>
      %c0_14 = arith.constant 0 : index
      %c0_15 = arith.constant 0 : index
      %15 = vector.load %arg7[%c0_14, %c0_15] : memref<128x128xf32, #tpu.memory_space<vmem>>, vector<128x128xf32>
      tpu.vector_store %arg7[%c0_14, %c0_15], %14 {strides = array<i32>} : memref<128x128xf32, #tpu.memory_space<vmem>>, vector<128x128xf32>,
    } else {
    }
    %c0 = arith.constant 0 : index
    %c0_1 = arith.constant 0 : index
    %3 = vector.load %arg3[%c0, %c0_1] : memref<128x4xf32, #tpu.memory_space<vmem>>, vector<128x4xf32>
    %c0_2 = arith.constant 0 : index
    %c0_3 = arith.constant 0 : index
    %4 = vector.load %arg4[%c0_2, %c0_3] : memref<4x128xf32, #tpu.memory_space<vmem>>, vector<4x128xf32>
    %cst = arith.constant dense<0.000000e+00> : vector<128x128xf32>
    %5 = tpu.matmul %3, %4, %cst {dimension_numbers = #tpu.dot_dimension_numbers<[1], [0], [0], [1], [0, 0, 1, 1], [], []>} : vector<128x4xf32>, vector<4x128xf32>, vector<128x128xf32> -> vector<128x128xf32>
    %c0_4 = arith.constant 0 : index
    %c0_5 = arith.constant 0 : index
    %6 = vector.load %arg7[%c0_4, %c0_5] : memref<128x128xf32, #tpu.memory_space<vmem>>, vector<128x128xf32>
    %c0_6 = arith.constant 0 : index
    %c0_7 = arith.constant 0 : index
    %7 = vector.load %arg2[%c0_6, %c0_7] : memref<128x128xf32, #tpu.memory_space<vmem>>, vector<128x128xf32>
    %cst_8 = arith.constant dense<0.000000e+00> : vector<128x128xf32>
    %8 = tpu.matmul %7, %5, %cst_8 {dimension_numbers = #tpu.dot_dimension_numbers<[1], [0], [0], [1], [0, 0, 1, 1], [], []>} : vector<128x128xf32>, vector<128x128xf32>, vector<128x128xf32> -> vector<128x128xf32>
    %9 = arith.addf %6, %8 : vector<128x128xf32>
    %c0_9 = arith.constant 0 : index
    %c0_10 = arith.constant 0 : index
    %10 = vector.load %arg7[%c0_9, %c0_10] : memref<128x128xf32, #tpu.memory_space<vmem>>, vector<128x128xf32>
    tpu.vector_store %arg7[%c0_9, %c0_10], %9 {strides = array<i32>} : memref<128x128xf32, #tpu.memory_space<vmem>>, vector<128x128xf32>,
    %c0_i32_11 = arith.constant 0 : i32
    %11 = arith.cmpi eq, %arg1, %c0_i32_11 : i32
    %12 = arith.extui %11 : i1 to i32
    %c0_i32_12 = arith.constant 0 : i32
    %13 = arith.cmpi ne, %12, %c0_i32_12 : i32
    scf.if %13 {
      %c0_13 = arith.constant 0 : index
      %c0_14 = arith.constant 0 : index
      %14 = vector.load %arg7[%c0_13, %c0_14] : memref<128x128xf32, #tpu.memory_space<vmem>>, vector<128x128xf32>
      %c0_15 = arith.constant 0 : index
      %c0_16 = arith.constant 0 : index
      %15 = vector.load %arg5[%c0_15, %c0_16] : memref<1x128xf32, #tpu.memory_space<vmem>>, vector<1x128xf32>
      %16 = vector.broadcast %15 : vector<1x128xf32> to vector<128x128xf32>
      %17 = arith.addf %14, %16 : vector<128x128xf32>
      %cst_17 = arith.constant 0.000000e+00 : f32
      %18 = vector.broadcast %cst_17 : f32 to vector<128x128xf32>
      %19 = arith.cmpf ogt, %17, %18 : vector<128x128xf32>
      %c0_18 = arith.constant 0 : index
      %c0_19 = arith.constant 0 : index
      %20 = vector.load %arg6[%c0_18, %c0_19] : memref<1x128xf32, #tpu.memory_space<vmem>>, vector<1x128xf32>
      %21 = vector.broadcast %20 : vector<1x128xf32> to vector<128x128xf32>
      %22 = arith.mulf %21, %17 : vector<128x128xf32>
      %23 = arith.select %19, %17, %22 : vector<128x128xi1>, vector<128x128xf32>
      %c0_20 = arith.constant 0 : index
      %c0_21 = arith.constant 0 : index
      %24 = vector.load %arg7[%c0_20, %c0_21] : memref<128x128xf32, #tpu.memory_space<vmem>>, vector<128x128xf32>
      tpu.vector_store %arg7[%c0_20, %c0_21], %23 {strides = array<i32>} : memref<128x128xf32, #tpu.memory_space<vmem>>, vector<128x128xf32>,
    } else {
    }
    return
  }
  func.func @transform_0(%arg0: i32, %arg1: i32) -> (i32, i32) {
    %c0_i32 = arith.constant 0 : i32
    return %arg0, %arg1 : i32, i32
  }
  func.func @transform_1(%arg0: i32, %arg1: i32) -> (i32, i32) {
    %c0_i32 = arith.constant 0 : i32
    %c0_i32_0 = arith.constant 0 : i32
    return %arg1, %c0_i32 : i32, i32
  }
  func.func @transform_2(%arg0: i32, %arg1: i32) -> (i32, i32) {
    %c0_i32 = arith.constant 0 : i32
    %c0_i32_0 = arith.constant 0 : i32
    %c0_i32_1 = arith.constant 0 : i32
    return %c0_i32, %c0_i32_0 : i32, i32
  }
  func.func @transform_3(%arg0: i32, %arg1: i32) -> (i32, i32) {
    %c0_i32 = arith.constant 0 : i32
    %c0_i32_0 = arith.constant 0 : i32
    %c0_i32_1 = arith.constant 0 : i32
    return %c0_i32, %c0_i32_0 : i32, i32
  }
  func.func @transform_4(%arg0: i32, %arg1: i32) -> (i32, i32) {
    %c0_i32 = arith.constant 0 : i32
    %c0_i32_0 = arith.constant 0 : i32
    %c0_i32_1 = arith.constant 0 : i32
    return %c0_i32, %c0_i32_0 : i32, i32
  }
  func.func @transform_5(%arg0: i32, %arg1: i32) -> (i32, i32) {
    %c0_i32 = arith.constant 0 : i32
    %c0_i32_0 = arith.constant 0 : i32
    return %arg0, %c0_i32 : i32, i32
  }
}

</mosaic_0001>

<llo_original>
// kernel: tpu_custom_call.1
$region0: #{tpu_custom_call.1}
  #allocation0 [shape = 'u32[]', space=smem, size = 0x4, offset = 0x4, fixed_abs, tag = 'smem constant byte address 0x4 - core index']
  #allocation1 [shape = 'u32[144,128]{1,0:T(1,128)}', space=vmem, size = 0x12000, scoped, tag = 'internal scratch']
  %s0 = inlined_call_operand.vmem [shape: f32[128,128], index: 0, kind: input, shape index: {}]
  %s1 = inlined_call_operand.vmem [shape: f32[128,4], index: 1, kind: input, shape index: {}]
  %s2 = inlined_call_operand.vmem [shape: f32[4,128], index: 2, kind: input, shape index: {}]
  %s3 = inlined_call_operand.vmem [shape: f32[1,128], index: 3, kind: input, shape index: {}]
  %s4 = inlined_call_operand.vmem [shape: f32[1,128], index: 4, kind: input, shape index: {}]
  %s5 = inlined_call_operand.hbm [shape: f32[128,128], index: 5, kind: output, shape index: {}]
  %s6 = sld [smem:[#allocation0]]
  $region38: #{tpu_custom_call.1} parent=0
    _
  %s8 = ssub.s32 1, %s6
  %s9 = scalar_select 0, %s8, %s6
  $region1: #{tpu_custom_call.1} parent=0
    #allocation2 [shape = 'u8[65536]{0}', space=vmem, size = 0x10000, scoped, tag = 'output window, operand 0, single buffered']
    #allocation3 [shape = 's32[1]{0}', space=sflag, size = 0x4, scoped, tag = 'scoped memory for tpu_custom_call.1']
    %10 = vsyncpa [#allocation3], 0
    // Predicated region
    $region2: #{tpu_custom_call.1} parent=1 // pred_check
      _
    $region3: #{tpu_custom_call.1} parent=1 // pred_check_branch
      %12 = sbr.rel (0) target = $region5
    $region4: #{tpu_custom_call.1} parent=1 // pred_region
      _
    $region5: #{tpu_custom_call.1} parent=1 // pred_fallthru
      _
    // Predicated region
    $region6: #{tpu_custom_call.1} parent=1 // pred_check
      _
    $region7: #{tpu_custom_call.1} parent=1 // pred_check_branch
      %14 = sbr.rel (0) target = $region9
    $region8: #{tpu_custom_call.1} parent=1 // pred_region
      _
    $region9: #{tpu_custom_call.1} parent=1 // pred_fallthru
      _
    // Predicated region
    $region10: #{tpu_custom_call.1} parent=1 // pred_check
      _
    $region11: #{tpu_custom_call.1} parent=1 // pred_check_branch
      %16 = sbr.rel (0) target = $region13
    $region12: #{tpu_custom_call.1} parent=1 // pred_region
      _
    $region13: #{tpu_custom_call.1} parent=1 // pred_fallthru
      _
    // Predicated region
    $region14: #{tpu_custom_call.1} parent=1 // pred_check
      _
    $region15: #{tpu_custom_call.1} parent=1 // pred_check_branch
      %18 = sbr.rel (0) target = $region17
    $region16: #{tpu_custom_call.1} parent=1 // pred_region
      _
    $region17: #{tpu_custom_call.1} parent=1 // pred_fallthru
      _
    // Predicated region
    $region18: #{tpu_custom_call.1} parent=1 // pred_check
      _
    $region19: #{tpu_custom_call.1} parent=1 // pred_check_branch
      %20 = sbr.rel (0) target = $region21
    $region20: #{tpu_custom_call.1} parent=1 // pred_region
      _
    $region21: #{tpu_custom_call.1} parent=1 // pred_fallthru
      _
    %p21 = scmp.eq.s32.totalorder 0, 0
    // Predicated region
    $region22: #{tpu_custom_call.1} parent=1 // pred_check
      %p22 = pneg %p21
    $region23: #{tpu_custom_call.1} parent=1 // pred_check_branch
      %24 = sbr.rel (%p22) target = $region25
    $region24: #{tpu_custom_call.1} parent=1 // pred_region
      %25 = vst [vmem:[#allocation2] sm:$0xff] 0.0
      %26 = vst [vmem:[#allocation2 + $0x8] sm:$0xff] 0.0
      %27 = vst [vmem:[#allocation2 + $0x10] sm:$0xff] 0.0
      %28 = vst [vmem:[#allocation2 + $0x18] sm:$0xff] 0.0
      %29 = vst [vmem:[#allocation2 + $0x20] sm:$0xff] 0.0
      %30 = vst [vmem:[#allocation2 + $0x28] sm:$0xff] 0.0
      %31 = vst [vmem:[#allocation2 + $0x30] sm:$0xff] 0.0
      %32 = vst [vmem:[#allocation2 + $0x38] sm:$0xff] 0.0
      %33 = vst [vmem:[#allocation2 + $0x40] sm:$0xff] 0.0
      %34 = vst [vmem:[#allocation2 + $0x48] sm:$0xff] 0.0
      %35 = vst [vmem:[#allocation2 + $0x50] sm:$0xff] 0.0
      %36 = vst [vmem:[#allocation2 + $0x58] sm:$0xff] 0.0
      %37 = vst [vmem:[#allocation2 + $0x60] sm:$0xff] 0.0
      %38 = vst [vmem:[#allocation2 + $0x68] sm:$0xff] 0.0
      %39 = vst [vmem:[#allocation2 + $0x70] sm:$0xff] 0.0
      %40 = vst [vmem:[#allocation2 + $0x78] sm:$0xff] 0.0
    $region25: #{tpu_custom_call.1} parent=1 // pred_fallthru
      _
    %v41 = vld [vmem:[%s1] sm:$0xff]
    %v42 = vld [vmem:[%s1 + $0x8] sm:$0xff]
    %v43 = vld [vmem:[%s1 + $0x10] sm:$0xff]
    %v44 = vld [vmem:[%s1 + $0x18] sm:$0xff]
    %v45 = vld [vmem:[%s1 + $0x20] sm:$0xff]
    %v46 = vld [vmem:[%s1 + $0x28] sm:$0xff]
    %v47 = vld [vmem:[%s1 + $0x30] sm:$0xff]
    %v48 = vld [vmem:[%s1 + $0x38] sm:$0xff]
    %v49 = vld [vmem:[%s1 + $0x40] sm:$0xff]
    %v50 = vld [vmem:[%s1 + $0x48] sm:$0xff]
    %v51 = vld [vmem:[%s1 + $0x50] sm:$0xff]
    %v52 = vld [vmem:[%s1 + $0x58] sm:$0xff]
    %v53 = vld [vmem:[%s1 + $0x60] sm:$0xff]
    %v54 = vld [vmem:[%s1 + $0x68] sm:$0xff]
    %v55 = vld [vmem:[%s1 + $0x70] sm:$0xff]
    %v56 = vld [vmem:[%s1 + $0x78] sm:$0xff]
    %v57 = vld [vmem:[%s2] sm:$0xf]
    %vm58 = vcmask 31744
    %v60 = vsel %vm58, %v41, 0
    %v63 = vsel %vm58, %v42, 0
    %v66 = vsel %vm58, %v43, 0
    %v69 = vsel %vm58, %v44, 0
    %v72 = vsel %vm58, %v45, 0
    %v75 = vsel %vm58, %v46, 0
    %v78 = vsel %vm58, %v47, 0
    %v81 = vsel %vm58, %v48, 0
    %v84 = vsel %vm58, %v49, 0
    %v87 = vsel %vm58, %v50, 0
    %v90 = vsel %vm58, %v51, 0
    %v93 = vsel %vm58, %v52, 0
    %v96 = vsel %vm58, %v53, 0
    %v99 = vsel %vm58, %v54, 0
    %v102 = vsel %vm58, %v55, 0
    %v105 = vsel %vm58, %v56, 0
    %vm107 = vcmask 1043456
    %v109 = vsel %vm107, %v57, 0
    %111 = vmatprep.subr.mxu0 0.0
    %112 = vmatpush1.msra.mxu0 %v109
    %113 = vmatprep.subr.mxu0 0.0
    %114 = vmatpush1.msra.mxu0 0.0
    %115 = vmatprep.subr.mxu0 0.0
    %116 = vmatpush1.msra.mxu0 0.0
    %117 = vmatprep.subr.mxu0 0.0
    %118 = vmatpush1.msra.mxu0 0.0
    %119 = vmatprep.subr.mxu0 0.0
    %120 = vmatpush1.msra.mxu0 0.0
    %121 = vmatprep.subr.mxu0 0.0
    %122 = vmatpush1.msra.mxu0 0.0
    %123 = vmatprep.subr.mxu0 0.0
    %124 = vmatpush1.msra.mxu0 0.0
    %125 = vmatprep.subr.mxu0 0.0
    %126 = vmatpush1.msra.mxu0 0.0
    %127 = vmatprep.subr.mxu0 0.0
    %128 = vmatpush1.msra.mxu0 0.0
    %129 = vmatprep.subr.mxu0 0.0
    %130 = vmatpush1.msra.mxu0 0.0
    %131 = vmatprep.subr.mxu0 0.0
    %132 = vmatpush1.msra.mxu0 0.0
    %133 = vmatprep.subr.mxu0 0.0
    %134 = vmatpush1.msra.mxu0 0.0
    %135 = vmatprep.subr.mxu0 0.0
    %136 = vmatpush1.msra.mxu0 0.0
    %137 = vmatprep.subr.mxu0 0.0
    %138 = vmatpush1.msra.mxu0 0.0
    %139 = vmatprep.subr.mxu0 0.0
    %140 = vmatpush1.msra.mxu0 0.0
    %141 = vmatprep.subr.mxu0 0.0
    %142 = vmatpush1.msra.mxu0 0.0
    %143 = vmatprep.subr.mxu0 0.0
    %144 = vmatpush1.msra.mxu0 0.0
    %145 = vmatprep.subr.mxu0 0.0
    %146 = vmatpush1.msra.mxu0 0.0
    %147 = vmatprep.subr.mxu0 0.0
    %148 = vmatpush1.msra.mxu0 0.0
    %149 = vmatprep.subr.mxu0 0.0
    %150 = vmatpush1.msra.mxu0 0.0
    %151 = vmatprep.subr.mxu0 0.0
    %152 = vmatpush1.msra.mxu0 0.0
    %153 = vmatprep.subr.mxu0 0.0
    %154 = vmatpush1.msra.mxu0 0.0
    %155 = vmatprep.subr.mxu0 0.0
    %156 = vmatpush1.msra.mxu0 0.0
    %157 = vmatprep.subr.mxu0 0.0
    %158 = vmatpush1.msra.mxu0 0.0
    %159 = vmatprep.subr.mxu0 0.0
    %160 = vmatpush1.msra.mxu0 0.0
    %161 = vmatprep.subr.mxu0 0.0
    %162 = vmatpush1.msra.mxu0 0.0
    %163 = vmatprep.subr.mxu0 0.0
    %164 = vmatpush1.msra.mxu0 0.0
    %165 = vmatprep.subr.mxu0 0.0
    %166 = vmatpush1.msra.mxu0 0.0
    %167 = vmatprep.subr.mxu0 0.0
    %168 = vmatpush1.msra.mxu0 0.0
    %169 = vmatprep.subr.mxu0 0.0
    %170 = vmatpush1.msra.mxu0 0.0
    %171 = vmatprep.subr.mxu0 0.0
    %172 = vmatpush1.msra.mxu0 0.0
    %173 = vmatprep.subr.mxu0 0.0
    %174 = vmatpush1.msra.mxu0 0.0
    %175 = vmatprep.mubr.f32.mxu0 0.0
    %176 = vmatmul.mubr.f32.gmra.mrb[0].mxu0 %v60
    %v177 = vpop.f32.mrb[0].mxu0
    %v178 = vadd.f32 0.0, %v177
    %v179 = vpop.f32.mrb[0].mxu0
    %180 = vmatprep.mubr.f32.mxu0 0.0
    %181 = vmatmul.mubr.f32.gmra.mrb[0].mxu0 %v63
    %v182 = vpop.f32.mrb[0].mxu0
    %v183 = vadd.f32 0.0, %v182
    %v184 = vpop.f32.mrb[0].mxu0
    %185 = vmatprep.mubr.f32.mxu0 0.0
    %186 = vmatmul.mubr.f32.gmra.mrb[0].mxu0 %v66
    %v187 = vpop.f32.mrb[0].mxu0
    %v188 = vadd.f32 0.0, %v187
    %v189 = vpop.f32.mrb[0].mxu0
    %190 = vmatprep.mubr.f32.mxu0 0.0
    %191 = vmatmul.mubr.f32.gmra.mrb[0].mxu0 %v69
    %v192 = vpop.f32.mrb[0].mxu0
    %v193 = vadd.f32 0.0, %v192
    %v194 = vpop.f32.mrb[0].mxu0
    %195 = vmatprep.mubr.f32.mxu0 0.0
    %196 = vmatmul.mubr.f32.gmra.mrb[0].mxu0 %v72
    %v197 = vpop.f32.mrb[0].mxu0
    %v198 = vadd.f32 0.0, %v197
    %v199 = vpop.f32.mrb[0].mxu0
    %200 = vmatprep.mubr.f32.mxu0 0.0
    %201 = vmatmul.mubr.f32.gmra.mrb[0].mxu0 %v75
    %v202 = vpop.f32.mrb[0].mxu0
    %v203 = vadd.f32 0.0, %v202
    %v204 = vpop.f32.mrb[0].mxu0
    %205 = vmatprep.mubr.f32.mxu0 0.0
    %206 = vmatmul.mubr.f32.gmra.mrb[0].mxu0 %v78
    %v207 = vpop.f32.mrb[0].mxu0
    %v208 = vadd.f32 0.0, %v207
    %v209 = vpop.f32.mrb[0].mxu0
    %210 = vmatprep.mubr.f32.mxu0 0.0
    %211 = vmatmul.mubr.f32.gmra.mrb[0].mxu0 %v81
    %v212 = vpop.f32.mrb[0].mxu0
    %v213 = vadd.f32 0.0, %v212
    %v214 = vpop.f32.mrb[0].mxu0
    %215 = vmatprep.mubr.f32.mxu0 0.0
    %216 = vmatmul.mubr.f32.gmra.mrb[0].mxu0 %v84
    %v217 = vpop.f32.mrb[0].mxu0
    %v218 = vadd.f32 0.0, %v217
    %v219 = vpop.f32.mrb[0].mxu0
    %220 = vmatprep.mubr.f32.mxu0 0.0
    %221 = vmatmul.mubr.f32.gmra.mrb[0].mxu0 %v87
    %v222 = vpop.f32.mrb[0].mxu0
    %v223 = vadd.f32 0.0, %v222
    %v224 = vpop.f32.mrb[0].mxu0
    %225 = vmatprep.mubr.f32.mxu0 0.0
    %226 = vmatmul.mubr.f32.gmra.mrb[0].mxu0 %v90
    %v227 = vpop.f32.mrb[0].mxu0
    %v228 = vadd.f32 0.0, %v227
    %v229 = vpop.f32.mrb[0].mxu0
    %230 = vmatprep.mubr.f32.mxu0 0.0
    %231 = vmatmul.mubr.f32.gmra.mrb[0].mxu0 %v93
    %v232 = vpop.f32.mrb[0].mxu0
    %v233 = vadd.f32 0.0, %v232
    %v234 = vpop.f32.mrb[0].mxu0
    %235 = vmatprep.mubr.f32.mxu0 0.0
    %236 = vmatmul.mubr.f32.gmra.mrb[0].mxu0 %v96
    %v237 = vpop.f32.mrb[0].mxu0
    %v238 = vadd.f32 0.0, %v237
    %v239 = vpop.f32.mrb[0].mxu0
    %240 = vmatprep.mubr.f32.mxu0 0.0
    %241 = vmatmul.mubr.f32.gmra.mrb[0].mxu0 %v99
    %v242 = vpop.f32.mrb[0].mxu0
    %v243 = vadd.f32 0.0, %v242
    %v244 = vpop.f32.mrb[0].mxu0
    %245 = vmatprep.mubr.f32.mxu0 0.0
    %246 = vmatmul.mubr.f32.gmra.mrb[0].mxu0 %v102
    %v247 = vpop.f32.mrb[0].mxu0
    %v248 = vadd.f32 0.0, %v247
    %v249 = vpop.f32.mrb[0].mxu0
    %250 = vmatprep.mubr.f32.mxu0 0.0
    %251 = vmatmul.mubr.f32.gmra.mrb[0].mxu0 %v105
    %v252 = vpop.f32.mrb[0].mxu0
    %v253 = vadd.f32 0.0, %v252
    %v254 = vpop.f32.mrb[0].mxu0
    %255 = vdwg.mxu0
    %v256 = vld [vmem:[#allocation2] sm:$0xff]
    %v257 = vld [vmem:[#allocation2 + $0x8] sm:$0xff]
    %v258 = vld [vmem:[#allocation2 + $0x10] sm:$0xff]
    %v259 = vld [vmem:[#allocation2 + $0x18] sm:$0xff]
    %v260 = vld [vmem:[#allocation2 + $0x20] sm:$0xff]
    %v261 = vld [vmem:[#allocation2 + $0x28] sm:$0xff]
    %v262 = vld [vmem:[#allocation2 + $0x30] sm:$0xff]
    %v263 = vld [vmem:[#allocation2 + $0x38] sm:$0xff]
    %v264 = vld [vmem:[#allocation2 + $0x40] sm:$0xff]
    %v265 = vld [vmem:[#allocation2 + $0x48] sm:$0xff]
    %v266 = vld [vmem:[#allocation2 + $0x50] sm:$0xff]
    %v267 = vld [vmem:[#allocation2 + $0x58] sm:$0xff]
    %v268 = vld [vmem:[#allocation2 + $0x60] sm:$0xff]
    %v269 = vld [vmem:[#allocation2 + $0x68] sm:$0xff]
    %v270 = vld [vmem:[#allocation2 + $0x70] sm:$0xff]
    %v271 = vld [vmem:[#allocation2 + $0x78] sm:$0xff]
    %v272 = vld [vmem:[%s0] sm:$0xff]
    %v273 = vld [vmem:[%s0 + $0x8] sm:$0xff]
    %v274 = vld [vmem:[%s0 + $0x10] sm:$0xff]
    %v275 = vld [vmem:[%s0 + $0x18] sm:$0xff]
    %v276 = vld [vmem:[%s0 + $0x20] sm:$0xff]
    %v277 = vld [vmem:[%s0 + $0x28] sm:$0xff]
    %v278 = vld [vmem:[%s0 + $0x30] sm:$0xff]
    %v279 = vld [vmem:[%s0 + $0x38] sm:$0xff]
    %v280 = vld [vmem:[%s0 + $0x40] sm:$0xff]
    %v281 = vld [vmem:[%s0 + $0x48] sm:$0xff]
    %v282 = vld [vmem:[%s0 + $0x50] sm:$0xff]
    %v283 = vld [vmem:[%s0 + $0x58] sm:$0xff]
    %v284 = vld [vmem:[%s0 + $0x60] sm:$0xff]
    %v285 = vld [vmem:[%s0 + $0x68] sm:$0xff]
    %v286 = vld [vmem:[%s0 + $0x70] sm:$0xff]
    %v287 = vld [vmem:[%s0 + $0x78] sm:$0xff]
    %288 = vmatprep.subr.mxu0 0.0
    %289 = vmatpush1.msra.mxu0 %v178
    %290 = vmatprep.subr.mxu0 0.0
    %291 = vmatpush1.msra.mxu0 %v183
    %292 = vmatprep.subr.mxu0 0.0
    %293 = vmatpush1.msra.mxu0 %v188
    %294 = vmatprep.subr.mxu0 0.0
    %295 = vmatpush1.msra.mxu0 %v193
    %296 = vmatprep.subr.mxu0 0.0
    %297 = vmatpush1.msra.mxu0 %v198
    %298 = vmatprep.subr.mxu0 0.0
    %299 = vmatpush1.msra.mxu0 %v203
    %300 = vmatprep.subr.mxu0 0.0
    %301 = vmatpush1.msra.mxu0 %v208
    %302 = vmatprep.subr.mxu0 0.0
    %303 = vmatpush1.msra.mxu0 %v213
    %304 = vmatprep.subr.mxu0 0.0
    %305 = vmatpush1.msra.mxu0 %v218
    %306 = vmatprep.subr.mxu0 0.0
    %307 = vmatpush1.msra.mxu0 %v223
    %308 = vmatprep.subr.mxu0 0.0
    %309 = vmatpush1.msra.mxu0 %v228
    %310 = vmatprep.subr.mxu0 0.0
    %311 = vmatpush1.msra.mxu0 %v233
    %312 = vmatprep.subr.mxu0 0.0
    %313 = vmatpush1.msra.mxu0 %v238
    %314 = vmatprep.subr.mxu0 0.0
    %315 = vmatpush1.msra.mxu0 %v243
    %316 = vmatprep.subr.mxu0 0.0
    %317 = vmatpush1.msra.mxu0 %v248
    %318 = vmatprep.subr.mxu0 0.0
    %319 = vmatpush1.msra.mxu0 %v253
    %320 = vmatprep.subr.mxu0 0.0
    %321 = vmatpush1.msra.mxu0 0.0
    %322 = vmatprep.subr.mxu0 0.0
    %323 = vmatpush1.msra.mxu0 0.0
    %324 = vmatprep.subr.mxu0 0.0
    %325 = vmatpush1.msra.mxu0 0.0
    %326 = vmatprep.subr.mxu0 0.0
    %327 = vmatpush1.msra.mxu0 0.0
    %328 = vmatprep.subr.mxu0 0.0
    %329 = vmatpush1.msra.mxu0 0.0
    %330 = vmatprep.subr.mxu0 0.0
    %331 = vmatpush1.msra.mxu0 0.0
    %332 = vmatprep.subr.mxu0 0.0
    %333 = vmatpush1.msra.mxu0 0.0
    %334 = vmatprep.subr.mxu0 0.0
    %335 = vmatpush1.msra.mxu0 0.0
    %336 = vmatprep.subr.mxu0 0.0
    %337 = vmatpush1.msra.mxu0 0.0
    %338 = vmatprep.subr.mxu0 0.0
    %339 = vmatpush1.msra.mxu0 0.0
    %340 = vmatprep.subr.mxu0 0.0
    %341 = vmatpush1.msra.mxu0 0.0
    %342 = vmatprep.subr.mxu0 0.0
    %343 = vmatpush1.msra.mxu0 0.0
    %344 = vmatprep.subr.mxu0 0.0
    %345 = vmatpush1.msra.mxu0 0.0
    %346 = vmatprep.subr.mxu0 0.0
    %347 = vmatpush1.msra.mxu0 0.0
    %348 = vmatprep.subr.mxu0 0.0
    %349 = vmatpush1.msra.mxu0 0.0
    %350 = vmatprep.subr.mxu0 0.0
    %351 = vmatpush1.msra.mxu0 0.0
    %352 = vmatprep.mubr.f32.mxu0 0.0
    %353 = vmatmul.mubr.f32.gmra.mrb[0].mxu0 %v272
    %v354 = vpop.f32.mrb[0].mxu0
    %v355 = vadd.f32 0.0, %v354
    %v356 = vpop.f32.mrb[0].mxu0
    %357 = vmatprep.mubr.f32.mxu0 0.0
    %358 = vmatmul.mubr.f32.gmra.mrb[0].mxu0 %v273
    %v359 = vpop.f32.mrb[0].mxu0
    %v360 = vadd.f32 0.0, %v359
    %v361 = vpop.f32.mrb[0].mxu0
    %362 = vmatprep.mubr.f32.mxu0 0.0
    %363 = vmatmul.mubr.f32.gmra.mrb[0].mxu0 %v274
    %v364 = vpop.f32.mrb[0].mxu0
    %v365 = vadd.f32 0.0, %v364
    %v366 = vpop.f32.mrb[0].mxu0
    %367 = vmatprep.mubr.f32.mxu0 0.0
    %368 = vmatmul.mubr.f32.gmra.mrb[0].mxu0 %v275
    %v369 = vpop.f32.mrb[0].mxu0
    %v370 = vadd.f32 0.0, %v369
    %v371 = vpop.f32.mrb[0].mxu0
    %372 = vmatprep.mubr.f32.mxu0 0.0
    %373 = vmatmul.mubr.f32.gmra.mrb[0].mxu0 %v276
    %v374 = vpop.f32.mrb[0].mxu0
    %v375 = vadd.f32 0.0, %v374
    %v376 = vpop.f32.mrb[0].mxu0
    %377 = vmatprep.mubr.f32.mxu0 0.0
    %378 = vmatmul.mubr.f32.gmra.mrb[0].mxu0 %v277
    %v379 = vpop.f32.mrb[0].mxu0
    %v380 = vadd.f32 0.0, %v379
    %v381 = vpop.f32.mrb[0].mxu0
    %382 = vmatprep.mubr.f32.mxu0 0.0
    %383 = vmatmul.mubr.f32.gmra.mrb[0].mxu0 %v278
    %v384 = vpop.f32.mrb[0].mxu0
    %v385 = vadd.f32 0.0, %v384
    %v386 = vpop.f32.mrb[0].mxu0
    %387 = vmatprep.mubr.f32.mxu0 0.0
    %388 = vmatmul.mubr.f32.gmra.mrb[0].mxu0 %v279
    %v389 = vpop.f32.mrb[0].mxu0
    %v390 = vadd.f32 0.0, %v389
    %v391 = vpop.f32.mrb[0].mxu0
    %392 = vmatprep.mubr.f32.mxu0 0.0
    %393 = vmatmul.mubr.f32.gmra.mrb[0].mxu0 %v280
    %v394 = vpop.f32.mrb[0].mxu0
    %v395 = vadd.f32 0.0, %v394
    %v396 = vpop.f32.mrb[0].mxu0
    %397 = vmatprep.mubr.f32.mxu0 0.0
    %398 = vmatmul.mubr.f32.gmra.mrb[0].mxu0 %v281
    %v399 = vpop.f32.mrb[0].mxu0
    %v400 = vadd.f32 0.0, %v399
    %v401 = vpop.f32.mrb[0].mxu0
    %402 = vmatprep.mubr.f32.mxu0 0.0
    %403 = vmatmul.mubr.f32.gmra.mrb[0].mxu0 %v282
    %v404 = vpop.f32.mrb[0].mxu0
    %v405 = vadd.f32 0.0, %v404
    %v406 = vpop.f32.mrb[0].mxu0
    %407 = vmatprep.mubr.f32.mxu0 0.0
    %408 = vmatmul.mubr.f32.gmra.mrb[0].mxu0 %v283
    %v409 = vpop.f32.mrb[0].mxu0
    %v410 = vadd.f32 0.0, %v409
    %v411 = vpop.f32.mrb[0].mxu0
    %412 = vmatprep.mubr.f32.mxu0 0.0
    %413 = vmatmul.mubr.f32.gmra.mrb[0].mxu0 %v284
    %v414 = vpop.f32.mrb[0].mxu0
    %v415 = vadd.f32 0.0, %v414
    %v416 = vpop.f32.mrb[0].mxu0
    %417 = vmatprep.mubr.f32.mxu0 0.0
    %418 = vmatmul.mubr.f32.gmra.mrb[0].mxu0 %v285
    %v419 = vpop.f32.mrb[0].mxu0
    %v420 = vadd.f32 0.0, %v419
    %v421 = vpop.f32.mrb[0].mxu0
    %422 = vmatprep.mubr.f32.mxu0 0.0
    %423 = vmatmul.mubr.f32.gmra.mrb[0].mxu0 %v286
    %v424 = vpop.f32.mrb[0].mxu0
    %v425 = vadd.f32 0.0, %v424
    %v426 = vpop.f32.mrb[0].mxu0
    %427 = vmatprep.mubr.f32.mxu0 0.0
    %428 = vmatmul.mubr.f32.gmra.mrb[0].mxu0 %v287
    %v429 = vpop.f32.mrb[0].mxu0
    %v430 = vadd.f32 0.0, %v429
    %v431 = vpop.f32.mrb[0].mxu0
    %432 = vdwg.mxu0
    %v433 = vadd.f32 %v256, %v355
    %v434 = vadd.f32 %v257, %v360
    %v435 = vadd.f32 %v258, %v365
    %v436 = vadd.f32 %v259, %v370
    %v437 = vadd.f32 %v260, %v375
    %v438 = vadd.f32 %v261, %v380
    %v439 = vadd.f32 %v262, %v385
    %v440 = vadd.f32 %v263, %v390
    %v441 = vadd.f32 %v264, %v395
    %v442 = vadd.f32 %v265, %v400
    %v443 = vadd.f32 %v266, %v405
    %v444 = vadd.f32 %v267, %v410
    %v445 = vadd.f32 %v268, %v415
    %v446 = vadd.f32 %v269, %v420
    %v447 = vadd.f32 %v270, %v425
    %v448 = vadd.f32 %v271, %v430
    %449 = vst [vmem:[#allocation2] sm:$0xff] %v433
    %450 = vst [vmem:[#allocation2 + $0x8] sm:$0xff] %v434
    %451 = vst [vmem:[#allocation2 + $0x10] sm:$0xff] %v435
    %452 = vst [vmem:[#allocation2 + $0x18] sm:$0xff] %v436
    %453 = vst [vmem:[#allocation2 + $0x20] sm:$0xff] %v437
    %454 = vst [vmem:[#allocation2 + $0x28] sm:$0xff] %v438
    %455 = vst [vmem:[#allocation2 + $0x30] sm:$0xff] %v439
    %456 = vst [vmem:[#allocation2 + $0x38] sm:$0xff] %v440
    %457 = vst [vmem:[#allocation2 + $0x40] sm:$0xff] %v441
    %458 = vst [vmem:[#allocation2 + $0x48] sm:$0xff] %v442
    %459 = vst [vmem:[#allocation2 + $0x50] sm:$0xff] %v443
    %460 = vst [vmem:[#allocation2 + $0x58] sm:$0xff] %v444
    %461 = vst [vmem:[#allocation2 + $0x60] sm:$0xff] %v445
    %462 = vst [vmem:[#allocation2 + $0x68] sm:$0xff] %v446
    %463 = vst [vmem:[#allocation2 + $0x70] sm:$0xff] %v447
    %464 = vst [vmem:[#allocation2 + $0x78] sm:$0xff] %v448
    // Predicated region
    $region26: #{tpu_custom_call.1} parent=1 // pred_check
      %p465 = pneg %p21
    $region27: #{tpu_custom_call.1} parent=1 // pred_check_branch
      %467 = sbr.rel (%p465) target = $region29
    $region28: #{tpu_custom_call.1} parent=1 // pred_region
      %v468 = vld [vmem:[#allocation2] sm:$0xff]
      %v469 = vld [vmem:[#allocation2 + $0x8] sm:$0xff]
      %v470 = vld [vmem:[#allocation2 + $0x10] sm:$0xff]
      %v471 = vld [vmem:[#allocation2 + $0x18] sm:$0xff]
      %v472 = vld [vmem:[#allocation2 + $0x20] sm:$0xff]
      %v473 = vld [vmem:[#allocation2 + $0x28] sm:$0xff]
      %v474 = vld [vmem:[#allocation2 + $0x30] sm:$0xff]
      %v475 = vld [vmem:[#allocation2 + $0x38] sm:$0xff]
      %v476 = vld [vmem:[#allocation2 + $0x40] sm:$0xff]
      %v477 = vld [vmem:[#allocation2 + $0x48] sm:$0xff]
      %v478 = vld [vmem:[#allocation2 + $0x50] sm:$0xff]
      %v479 = vld [vmem:[#allocation2 + $0x58] sm:$0xff]
      %v480 = vld [vmem:[#allocation2 + $0x60] sm:$0xff]
      %v481 = vld [vmem:[#allocation2 + $0x68] sm:$0xff]
      %v482 = vld [vmem:[#allocation2 + $0x70] sm:$0xff]
      %v483 = vld [vmem:[#allocation2 + $0x78] sm:$0xff]
      %v484 = vld [vmem:[%s3] sm:$0x1]
      %v486 = vlaneseq
      %v487 = vshrl.u32 %v486, 7
      %v488 = vsub.s32 0, %v487
      %v489 = vrot.slane %v484, %v488
      %v491 = vadd.f32 %v468, %v489
      %v492 = vadd.f32 %v469, %v489
      %v493 = vadd.f32 %v470, %v489
      %v494 = vadd.f32 %v471, %v489
      %v495 = vadd.f32 %v472, %v489
      %v496 = vadd.f32 %v473, %v489
      %v497 = vadd.f32 %v474, %v489
      %v498 = vadd.f32 %v475, %v489
      %v499 = vadd.f32 %v476, %v489
      %v500 = vadd.f32 %v477, %v489
      %v501 = vadd.f32 %v478, %v489
      %v502 = vadd.f32 %v479, %v489
      %v503 = vadd.f32 %v480, %v489
      %v504 = vadd.f32 %v481, %v489
      %v505 = vadd.f32 %v482, %v489
      %v506 = vadd.f32 %v483, %v489
      %vm507 = vcmp.gt.f32.partialorder %v491, 0.0
      %vm508 = vcmp.gt.f32.partialorder %v492, 0.0
      %vm509 = vcmp.gt.f32.partialorder %v493, 0.0
      %vm510 = vcmp.gt.f32.partialorder %v494, 0.0
      %vm511 = vcmp.gt.f32.partialorder %v495, 0.0
      %vm512 = vcmp.gt.f32.partialorder %v496, 0.0
      %vm513 = vcmp.gt.f32.partialorder %v497, 0.0
      %vm514 = vcmp.gt.f32.partialorder %v498, 0.0
      %vm515 = vcmp.gt.f32.partialorder %v499, 0.0
      %vm516 = vcmp.gt.f32.partialorder %v500, 0.0
      %vm517 = vcmp.gt.f32.partialorder %v501, 0.0
      %vm518 = vcmp.gt.f32.partialorder %v502, 0.0
      %vm519 = vcmp.gt.f32.partialorder %v503, 0.0
      %vm520 = vcmp.gt.f32.partialorder %v504, 0.0
      %vm521 = vcmp.gt.f32.partialorder %v505, 0.0
      %vm522 = vcmp.gt.f32.partialorder %v506, 0.0
      %v523 = vld [vmem:[%s4] sm:$0x1]
      %v525 = vlaneseq
      %v526 = vshrl.u32 %v525, 7
      %v527 = vsub.s32 0, %v526
      %v528 = vrot.slane %v523, %v527
      %v530 = vmul.f32 %v528, %v491
      %v531 = vmul.f32 %v528, %v492
      %v532 = vmul.f32 %v528, %v493
      %v533 = vmul.f32 %v528, %v494
      %v534 = vmul.f32 %v528, %v495
      %v535 = vmul.f32 %v528, %v496
      %v536 = vmul.f32 %v528, %v497
      %v537 = vmul.f32 %v528, %v498
      %v538 = vmul.f32 %v528, %v499
      %v539 = vmul.f32 %v528, %v500
      %v540 = vmul.f32 %v528, %v501
      %v541 = vmul.f32 %v528, %v502
      %v542 = vmul.f32 %v528, %v503
      %v543 = vmul.f32 %v528, %v504
      %v544 = vmul.f32 %v528, %v505
      %v545 = vmul.f32 %v528, %v506
      %v546 = vsel %vm507, %v491, %v530
      %v547 = vsel %vm508, %v492, %v531
      %v548 = vsel %vm509, %v493, %v532
      %v549 = vsel %vm510, %v494, %v533
      %v550 = vsel %vm511, %v495, %v534
      %v551 = vsel %vm512, %v496, %v535
      %v552 = vsel %vm513, %v497, %v536
      %v553 = vsel %vm514, %v498, %v537
      %v554 = vsel %vm515, %v499, %v538
      %v555 = vsel %vm516, %v500, %v539
      %v556 = vsel %vm517, %v501, %v540
      %v557 = vsel %vm518, %v502, %v541
      %v558 = vsel %vm519, %v503, %v542
      %v559 = vsel %vm520, %v504, %v543
      %v560 = vsel %vm521, %v505, %v544
      %v561 = vsel %vm522, %v506, %v545
      %562 = vst [vmem:[#allocation2] sm:$0xff] %v546
      %563 = vst [vmem:[#allocation2 + $0x8] sm:$0xff] %v547
      %564 = vst [vmem:[#allocation2 + $0x10] sm:$0xff] %v548
      %565 = vst [vmem:[#allocation2 + $0x18] sm:$0xff] %v549
      %566 = vst [vmem:[#allocation2 + $0x20] sm:$0xff] %v550
      %567 = vst [vmem:[#allocation2 + $0x28] sm:$0xff] %v551
      %568 = vst [vmem:[#allocation2 + $0x30] sm:$0xff] %v552
      %569 = vst [vmem:[#allocation2 + $0x38] sm:$0xff] %v553
      %570 = vst [vmem:[#allocation2 + $0x40] sm:$0xff] %v554
      %571 = vst [vmem:[#allocation2 + $0x48] sm:$0xff] %v555
      %572 = vst [vmem:[#allocation2 + $0x50] sm:$0xff] %v556
      %573 = vst [vmem:[#allocation2 + $0x58] sm:$0xff] %v557
      %574 = vst [vmem:[#allocation2 + $0x60] sm:$0xff] %v558
      %575 = vst [vmem:[#allocation2 + $0x68] sm:$0xff] %v559
      %576 = vst [vmem:[#allocation2 + $0x70] sm:$0xff] %v560
      %577 = vst [vmem:[#allocation2 + $0x78] sm:$0xff] %v561
    $region29: #{tpu_custom_call.1} parent=1 // pred_fallthru
      _
    // Predicated region
    $region30: #{tpu_custom_call.1} parent=1 // pred_check
      _
    $region31: #{tpu_custom_call.1} parent=1 // pred_check_branch
      %579 = sbr.rel (0) target = $region33
    $region32: #{tpu_custom_call.1} parent=1 // pred_region
      %s581 = ssub.s32 2048, 2048
      %582 = vsyncadd [#allocation3], %s581
      %s583 = sshll.u32 [#allocation2], 4
      %s584 = int_to_ptr.vmem [resolvable:$true] %s583
      %589 = dma.vmem_to_hbm [thread:$0]  %s584, 2048, %s5, [#allocation3], 128, 128, 8
    $region33: #{tpu_custom_call.1} parent=1 // pred_fallthru
      _
    // Predicated region
    $region34: #{tpu_custom_call.1} parent=1 // pred_check
      _
    $region35: #{tpu_custom_call.1} parent=1 // pred_check_branch
      %591 = sbr.rel (0) target = $region37
    $region36: #{tpu_custom_call.1} parent=1 // pred_region
      %592 = dma.done [#allocation3], 2048
    $region37: #{tpu_custom_call.1} parent=1 // pred_fallthru
      _
    %593 = vsyncpa [#allocation3], 1

</llo_original>
